<compile_context>
chip_gen: v7x
topology: tpu7x:2x2x1
jax: 0.10.0
libtpu: 0.0.40
codegen_flags: <defaults>
</compile_context>

<pallas_src>
import jax
import jax.numpy as jnp
from jax.experimental import pallas as pl
from jax.experimental.pallas import tpu as pltpu


# ----------------------------------------------------------------------------
# Kernel
# ----------------------------------------------------------------------------
def _detect_kernel(x_ref, wt_ref, cst_ref, g_ref, *out_refs):
    """One (batch image, spatial tile) step.

    x_ref  : (cin, ts)  f32/bf16  activations, channel-major (raw NCHW slice)
    wt_ref : (N, cin)   bf16      1x1-conv weight, output-channel major (N=na*no)
    cst_ref: (N, 8)     f32       [:,0]=bias [:,1]=c1 [:,2]=c2 [:,3]=ix [:,4]=iy
    g_ref  : (2, ts)    f32       (grid - 0.5) * stride; row 0 = x, row 1 = y
    out_refs: (raw_ref, dec_ref) or (dec_ref,), each (N, ts)
    """
    x = x_ref[...]
    wt = wt_ref[...]
    if x.dtype != wt.dtype:
        x = x.astype(wt.dtype)          # no-op once the producer emits bf16
    # 1x1 conv == channel matmul on the MXU (bf16 operands, f32 accumulate).
    acc = jnp.dot(wt, x, preferred_element_type=jnp.float32)        # (N, ts)

    cst = cst_ref[...]
    raw = acc + cst[:, 0:1]                                         # + conv bias

    if len(out_refs) == 2:
        raw_ref, dec_ref = out_refs
        raw_ref[...] = raw.astype(raw_ref.dtype)
    else:
        (dec_ref,) = out_refs

    # Inference decode, factored to save one (N, ts) multiply:
    #   dec = s*(c1 + c2*s) + (ix*gx + iy*gy)
    s = jax.nn.sigmoid(raw)                                         # EUP, f32
    g = g_ref[...]
    off = cst[:, 3:4] * g[0:1, :] + cst[:, 4:5] * g[1:2, :]         # (N, ts)

    if dec_ref.dtype == jnp.bfloat16:
        # bf16 decode: halves the VPU tail on v6e/v7x (bf16 VALU/EUP).
        sb = s.astype(jnp.bfloat16)
        dec = sb * (cst[:, 1:2].astype(jnp.bfloat16)
                    + cst[:, 2:3].astype(jnp.bfloat16) * sb)
        dec = dec + off.astype(jnp.bfloat16)
    else:
        dec = s * (cst[:, 1:2] + cst[:, 2:3] * s) + off
    dec_ref[...] = dec.astype(dec_ref.dtype)


# ----------------------------------------------------------------------------
# Tiling helper
# ----------------------------------------------------------------------------
def _pick_spatial_tile(S, per_lane_bytes, bs, vmem_budget_bytes):
    """Largest divisor of S fitting the per-step VMEM budget.

    Prefers lane-dense tiles (multiples of 128 -> unmasked vst) and, when the
    batch alone cannot feed both of v7x's TensorCores (bs == 1), prefers a
    split plane so the parallel grid has >= 2 steps.
    """
    cap = max(1, int(vmem_budget_bytes // max(1, per_lane_bytes)))
    want_steps = 1 if bs >= 2 else 2
    divisors = [d for d in range(1, S + 1) if S % d == 0]
    for need_lane128, need_steps in ((True, want_steps), (True, 1),
                                     (False, want_steps), (False, 1)):
        cands = [d for d in divisors
                 if d <= cap
                 and ((not need_lane128) or d % 128 == 0 or d == S)
                 and S // d >= need_steps]
        if cands:
            return max(cands)
    return S


# ----------------------------------------------------------------------------
# Detect head
# ----------------------------------------------------------------------------
class DetectPallas:
    """Inference-mode YOLO Detect head (fused 1x1 conv + sigmoid + box decode).

    Per-level constants (transposed bf16 conv weight, decode-constant table) are
    precomputed ONCE at construction; grid offsets are cached per spatial size.
    """

    def __init__(self, weights, biases, anchors, strides, num_cls):
        anchors = jnp.asarray(anchors, jnp.float32)        # (nl, na, 2)
        self.num_cls = int(num_cls)
        self.no = self.num_cls + 5
        self.nl = int(anchors.shape[0])
        self.na = int(anchors.shape[1])
        self.N = self.na * self.no
        self.strides = [float(s) for s in strides]
        self.wt = []      # (N, cin) bf16 per level
        self.cst = []     # (N, 8)  f32  per level
        for i in range(self.nl):
            w = jnp.asarray(weights[i], jnp.float32)       # (cin, N)
            b = jnp.asarray(biases[i], jnp.float32).reshape(self.N)
            self.wt.append(w.T.astype(jnp.bfloat16))
            self.cst.append(self._make_constants(b, anchors[i], self.strides[i]))
        self._grid_cache = {}

    # Per-output-channel decode constants (channel n -> anchor a=n//no, field o=n%no):
    #   x,y : (2*sig - 0.5 + grid)*stride = (2*stride)*sig + (grid-0.5)*stride
    #   w,h : (2*sig)^2 * anchor          = (4*anchor)*sig^2
    #   rest: sig
    def _make_constants(self, bias_v, anchors_l, stride):
        no, N = self.no, self.N
        ch = jnp.arange(N)
        o = ch % no
        a = ch // no
        is_xy = o < 2
        is_wh = (o == 2) | (o == 3)
        c1 = jnp.where(is_xy, 2.0 * stride, jnp.where(is_wh, 0.0, 1.0))
        c2 = jnp.where(o == 2, 4.0 * anchors_l[a, 0],
                       jnp.where(o == 3, 4.0 * anchors_l[a, 1], 0.0))
        ix = (o == 0).astype(jnp.float32)
        iy = (o == 1).astype(jnp.float32)
        zero = jnp.zeros((N,), jnp.float32)
        return jnp.stack([bias_v,
                          c1.astype(jnp.float32),
                          c2.astype(jnp.float32),
                          ix, iy, zero, zero, zero], axis=1)          # (N, 8)

    def _grid_offsets(self, level, ny, nx):
        key = (level, ny, nx)
        g = self._grid_cache.get(key)
        if g is None:
            stride = self.strides[level]
            yy, xx = jnp.meshgrid(jnp.arange(ny, dtype=jnp.float32),
                                  jnp.arange(nx, dtype=jnp.float32), indexing="ij")
            g = jnp.stack([(xx.reshape(-1) - 0.5) * stride,
                           (yy.reshape(-1) - 0.5) * stride], axis=0)  # (2, S)
            self._grid_cache[key] = g
        return g

    def _level(self, i, x_nchw, *, with_raw, out_dtype, spatial_tile, vmem_budget):
        bs, cin, ny, nx = x_nchw.shape
        N, S = self.N, ny * nx
        n_outs = 2 if with_raw else 1
        in_bytes = jnp.dtype(x_nchw.dtype).itemsize
        out_bytes = jnp.dtype(out_dtype).itemsize

        if spatial_tile is None:
            per_lane = 2 * in_bytes * cin + 2 * n_outs * out_bytes * N + 2 * 4 * 2
            ts = _pick_spatial_tile(S, per_lane, bs, vmem_budget)
        else:
            ts = int(spatial_tile)
            assert S % ts == 0, "spatial_tile must divide ny*nx"
        # NOTE: when ts (or whole-plane S) is not a multiple of 128, output
        # stores are lane-masked (correct, just slower) -- only toy sizes hit this.

        # NCHW -> (bs, cin, S) is a free reshape (no data movement); the kernel
        # consumes the channel-major layout directly.
        x3 = x_nchw.reshape(bs, cin, S)
        wt, cst = self.wt[i], self.cst[i]
        g = self._grid_offsets(i, ny, nx)

        out_spec = pl.BlockSpec((None, N, ts), lambda bb, ss: (bb, 0, ss))
        out_shape = tuple(jax.ShapeDtypeStruct((bs, N, S), out_dtype)
                          for _ in range(n_outs))
        out_specs = tuple(out_spec for _ in range(n_outs))

        # Explicit VMEM limit sized from the double-buffered footprint (default
        # scoped limit is 16 MiB on v5e / 32 MiB on v6e & v7x).
        buf_bytes = (2 * in_bytes * cin * ts          # activations (x2 buffers)
                     + 2 * 4 * 2 * ts                 # grid offsets
                     + 2 * n_outs * out_bytes * N * ts  # outputs
                     + 2 * 2 * N * cin                # bf16 weight
                     + 2 * 4 * N * 8)                 # decode constants
        vmem_limit = int(min(56 << 20, max(16 << 20, buf_bytes + (4 << 20))))

        cost = pl.CostEstimate(
            flops=int(2 * bs * N * cin * S),
            transcendentals=int(bs * N * S),
            bytes_accessed=int(bs * S * (in_bytes * cin + n_outs * out_bytes * N)
                               + 2 * N * cin + 4 * N * 8 + 4 * 2 * S),
        )

        outs = pl.pallas_call(
            _detect_kernel,
            out_shape=out_shape,
            grid_spec=pltpu.PrefetchScalarGridSpec(
                num_scalar_prefetch=0,
                grid=(bs, S // ts),
                in_specs=[
                    pl.BlockSpec((None, cin, ts), lambda bb, ss: (bb, 0, ss)),  # acts
                    pl.BlockSpec((N, cin), lambda bb, ss: (0, 0)),              # weight
                    pl.BlockSpec((N, 8), lambda bb, ss: (0, 0)),                # consts
                    pl.BlockSpec((2, ts), lambda bb, ss: (0, ss)),              # grid
                ],
                out_specs=out_specs,
            ),
            compiler_params=pltpu.CompilerParams(
                dimension_semantics=("parallel", "parallel"),
                vmem_limit_bytes=vmem_limit),
            cost_estimate=cost,
        )(x3, wt, cst, g)

        if with_raw:
            raw_cm, dec_cm = outs
        else:
            (dec_cm,) = tuple(outs)
            raw_cm = None
        return raw_cm, dec_cm, (ny, nx)

    def __call__(self, xs, *, with_raw=True, out_dtype=jnp.float32,
                 channel_major=False, spatial_tile=None, vmem_budget=24 << 20):
        """Inference-mode Detect.forward.

        channel_major=False (module semantics):
            returns (z, raws): z = (bs, sum_i na*ny_i*nx_i, no),
            raws[i] = (bs, na, ny, nx, no) (None entries if with_raw=False).
        channel_major=True (fast inference path):
            returns (z_list, raw_list) of per-level (bs, na*no, ny*nx) tensors
            exactly as the kernel emits them -- skips the post-kernel HBM
            permute entirely.  Downstream consumers (confidence filter / NMS)
            should read this layout directly, or permute only surviving boxes.
        """
        zs, raws = [], []
        for i, x in enumerate(xs):
            raw_cm, dec_cm, (ny, nx) = self._level(
                i, x, with_raw=with_raw, out_dtype=out_dtype,
                spatial_tile=spatial_tile, vmem_budget=vmem_budget)
            if channel_major:
                zs.append(dec_cm)
                raws.append(raw_cm)
                continue
            bs = x.shape[0]
            na, no = self.na, self.no
            # Channel-to-minor permute (one XLA transpose per kept output).
            # This extra HBM round trip is the biggest remaining cost; use
            # channel_major=True to avoid it.
            dec5 = dec_cm.reshape(bs, na, no, ny, nx).transpose(0, 1, 3, 4, 2)
            zs.append(dec5.reshape(bs, na * ny * nx, no))
            if with_raw:
                raws.append(raw_cm.reshape(bs, na, no, ny, nx)
                            .transpose(0, 1, 3, 4, 2))
            else:
                raws.append(None)
        if channel_major:
            return zs, raws
        return jnp.concatenate(zs, axis=1), raws


# ----------------------------------------------------------------------------
# Pure-JAX reference mirroring the PyTorch module (eval mode)
# ----------------------------------------------------------------------------
def detect_forward_ref(xs_nchw, weights, biases, anchors, strides, num_cls):
    no = num_cls + 5
    zs, raws = [], []
    for i, x in enumerate(xs_nchw):
        bs, cin, ny, nx = x.shape
        na = anchors.shape[1]
        y = jnp.einsum("bchw,cn->bnhw", x, weights[i]) + biases[i].reshape(1, -1, 1, 1)
        y = y.reshape(bs, na, no, ny, nx).transpose(0, 1, 3, 4, 2)   # (bs,na,ny,nx,no)
        raws.append(y)
        s = jax.nn.sigmoid(y)
        yv, xv = jnp.meshgrid(jnp.arange(ny, dtype=jnp.float32),
                              jnp.arange(nx, dtype=jnp.float32), indexing="ij")
        grid = jnp.stack((xv, yv), 2).reshape(1, 1, ny, nx, 2)
        xy = (s[..., 0:2] * 2.0 - 0.5 + grid) * strides[i]
        wh = (s[..., 2:4] * 2.0) ** 2 * anchors[i].reshape(1, na, 1, 1, 2)
        dec = jnp.concatenate([xy, wh, s[..., 4:]], axis=-1)
        zs.append(dec.reshape(bs, -1, no))
    return jnp.concatenate(zs, axis=1), raws


# ----------------------------------------------------------------------------
# Demo / self-test
# ----------------------------------------------------------------------------
if __name__ == "__main__":
    key = jax.random.PRNGKey(0)

    # Small, deterministic configuration consistent with Detect(__init__).
    num_cls = 11                      # no = 16
    anchors_cfg = ((10, 13, 16, 30, 33, 23),
                   (30, 61, 62, 45, 59, 119))
    out_chs = (32, 64)
    strides = (8.0, 16.0)
    spatial = ((16, 16), (8, 8))
    bs = 2

    nl = len(anchors_cfg)
    na = len(anchors_cfg[0]) // 2
    no = num_cls + 5
    anchors = jnp.asarray(anchors_cfg, dtype=jnp.float32).reshape(nl, na, 2)

    keys = jax.random.split(key, 3 * nl)
    weights, biases, xs = [], [], []
    for i in range(nl):
        cin = out_chs[i]
        ny, nx = spatial[i]
        # conv weight (Cin, na*no)  (== torch (na*no, Cin, 1, 1) transposed)
        weights.append(0.05 * jax.random.normal(keys[3 * i], (cin, na * no), jnp.float32))
        biases.append(0.05 * jax.random.normal(keys[3 * i + 1], (1, na * no), jnp.float32))
        xs.append(jax.random.normal(keys[3 * i + 2], (bs, cin, ny, nx), jnp.float32))

    detector = DetectPallas(weights, biases, anchors, strides, num_cls)
    z_ref, raws_ref = detect_forward_ref(xs, weights, biases, anchors, strides, num_cls)

    # --- Path A: module-exact semantics (f32 outputs, raw tensor kept) -------
    z, raws = detector(xs, with_raw=True, out_dtype=jnp.float32)
    jax.block_until_ready(z)
    for r in raws:
        jax.block_until_ready(r)
    assert z.shape == (bs, na * sum(h * w for h, w in spatial), no)
    # bf16 matmul operands vs f32 reference: ~0.3% error, well inside tol.
    assert jnp.allclose(z, z_ref, rtol=1e-2, atol=5e-2)
    for r, rr in zip(raws, raws_ref):
        assert r.shape == rr.shape
        assert jnp.allclose(r, rr, rtol=1e-2, atol=5e-2)

    # --- Path B: fast inference path (bf16 I/O, no raw, no HBM permute) ------
    # TODO(synk): in a full model, fuse this bf16 cast into the producer conv's
    # epilogue instead of a standalone pass.
    xs_bf16 = [x.astype(jnp.bfloat16) for x in xs]
    zs_cm, raws_cm = detector(xs_bf16, with_raw=False,
                              out_dtype=jnp.bfloat16, channel_major=True)
    for z_cm in zs_cm:
        jax.block_until_ready(z_cm)
    assert all(r is None for r in raws_cm)
    # Host-side relayout is for VALIDATION ONLY; production consumers read the
    # channel-major (bs, N, S) tensors directly.
    z_fast_parts = []
    for i, z_cm in enumerate(zs_cm):
        ny, nx = spatial[i]
        assert z_cm.shape == (bs, na * no, ny * nx) and z_cm.dtype == jnp.bfloat16
        z5 = z_cm.astype(jnp.float32).reshape(bs, na, no, ny, nx).transpose(0, 1, 3, 4, 2)
        z_fast_parts.append(z5.reshape(bs, na * ny * nx, no))
    z_fast = jnp.concatenate(z_fast_parts, axis=1)
    assert jnp.allclose(z_fast, z_ref, rtol=3e-2, atol=1.0)

    print("KERNEL_OK")
</pallas_src>

<mosaic_0001>
module attributes {stable_mosaic.version = 11 : i64} {
  func.func @_detect_kernel(%arg0: i32, %arg1: i32, %arg2: memref<1x32x256xf32, #tpu.memory_space<vmem>>, %arg3: memref<48x32xbf16, #tpu.memory_space<vmem>>, %arg4: memref<48x8xf32, #tpu.memory_space<vmem>>, %arg5: memref<2x256xf32, #tpu.memory_space<vmem>>, %arg6: memref<1x48x256xf32, #tpu.memory_space<vmem>>, %arg7: memref<1x48x256xf32, #tpu.memory_space<vmem>>) attributes {dimension_semantics = [#tpu.dimension_semantics<parallel>, #tpu.dimension_semantics<parallel>], iteration_bounds = array<i64: 2, 1>, scalar_prefetch = 0 : i64, scratch_operands = 0 : i64, tpu.core_type = #tpu.core_type<tc>, window_params = [{transform_indices = @transform_0, window_bounds = array<i64: 1, 32, 256>}, {pipeline_mode = #tpu.pipeline_mode<synchronous>, transform_indices = @transform_1, window_bounds = array<i64: 48, 32>}, {pipeline_mode = #tpu.pipeline_mode<synchronous>, transform_indices = @transform_2, window_bounds = array<i64: 48, 8>}, {transform_indices = @transform_3, window_bounds = array<i64: 2, 256>}, {transform_indices = @transform_4, window_bounds = array<i64: 1, 48, 256>}, {transform_indices = @transform_5, window_bounds = array<i64: 1, 48, 256>}]} {
    %c0 = arith.constant 0 : index
    %c0_0 = arith.constant 0 : index
    %c0_1 = arith.constant 0 : index
    %0 = vector.load %arg2[%c0, %c0_0, %c0_1] : memref<1x32x256xf32, #tpu.memory_space<vmem>>, vector<1x32x256xf32>
    %1 = vector.shape_cast %0 : vector<1x32x256xf32> to vector<32x256xf32>
    %c0_2 = arith.constant 0 : index
    %c0_3 = arith.constant 0 : index
    %2 = vector.load %arg3[%c0_2, %c0_3] : memref<48x32xbf16, #tpu.memory_space<vmem>>, vector<48x32xbf16>
    %3 = arith.truncf %1 : vector<32x256xf32> to vector<32x256xbf16>
    %cst = arith.constant dense<0.000000e+00> : vector<48x256xf32>
    %4 = tpu.matmul %2, %3, %cst {dimension_numbers = #tpu.dot_dimension_numbers<[1], [0], [0], [1], [0, 0, 1, 1], [], []>} : vector<48x32xbf16>, vector<32x256xbf16>, vector<48x256xf32> -> vector<48x256xf32>
    %c0_4 = arith.constant 0 : index
    %c0_5 = arith.constant 0 : index
    %5 = vector.load %arg4[%c0_4, %c0_5] : memref<48x8xf32, #tpu.memory_space<vmem>>, vector<48x8xf32>
    %6 = vector.extract_strided_slice %5 {offsets = [0, 0], sizes = [48, 1], strides = [1, 1]} : vector<48x8xf32> to vector<48x1xf32>
    %7 = vector.broadcast %6 : vector<48x1xf32> to vector<48x256xf32>
    %8 = arith.addf %4, %7 : vector<48x256xf32>
    %c0_6 = arith.constant 0 : index
    %c0_7 = arith.constant 0 : index
    %c0_8 = arith.constant 0 : index
    %9 = vector.load %arg6[%c0_6, %c0_7, %c0_8] : memref<1x48x256xf32, #tpu.memory_space<vmem>>, vector<1x48x256xf32>
    %10 = vector.shape_cast %9 : vector<1x48x256xf32> to vector<48x256xf32>
    %11 = vector.shape_cast %8 : vector<48x256xf32> to vector<1x48x256xf32>
    tpu.vector_store %arg6[%c0_6, %c0_7, %c0_8], %11 {strides = array<i32>} : memref<1x48x256xf32, #tpu.memory_space<vmem>>, vector<1x48x256xf32>,
    %12 = arith.negf %8 : vector<48x256xf32>
    %13 = math.exp %12 : vector<48x256xf32>
    %cst_9 = arith.constant 1.000000e+00 : f32
    %14 = vector.broadcast %cst_9 : f32 to vector<48x256xf32>
    %15 = arith.addf %14, %13 : vector<48x256xf32>
    %16 = arith.divf %14, %15 : vector<48x256xf32>
    %c0_10 = arith.constant 0 : index
    %c0_11 = arith.constant 0 : index
    %17 = vector.load %arg5[%c0_10, %c0_11] : memref<2x256xf32, #tpu.memory_space<vmem>>, vector<2x256xf32>
    %18 = vector.extract_strided_slice %5 {offsets = [0, 3], sizes = [48, 1], strides = [1, 1]} : vector<48x8xf32> to vector<48x1xf32>
    %19 = vector.extract_strided_slice %17 {offsets = [0, 0], sizes = [1, 256], strides = [1, 1]} : vector<2x256xf32> to vector<1x256xf32>
    %20 = vector.broadcast %18 : vector<48x1xf32> to vector<48x256xf32>
    %21 = vector.broadcast %19 : vector<1x256xf32> to vector<48x256xf32>
    %22 = arith.mulf %20, %21 : vector<48x256xf32>
    %23 = vector.extract_strided_slice %5 {offsets = [0, 4], sizes = [48, 1], strides = [1, 1]} : vector<48x8xf32> to vector<48x1xf32>
    %24 = vector.extract_strided_slice %17 {offsets = [1, 0], sizes = [1, 256], strides = [1, 1]} : vector<2x256xf32> to vector<1x256xf32>
    %25 = vector.broadcast %23 : vector<48x1xf32> to vector<48x256xf32>
    %26 = vector.broadcast %24 : vector<1x256xf32> to vector<48x256xf32>
    %27 = arith.mulf %25, %26 : vector<48x256xf32>
    %28 = arith.addf %22, %27 : vector<48x256xf32>
    %29 = vector.extract_strided_slice %5 {offsets = [0, 1], sizes = [48, 1], strides = [1, 1]} : vector<48x8xf32> to vector<48x1xf32>
    %30 = vector.extract_strided_slice %5 {offsets = [0, 2], sizes = [48, 1], strides = [1, 1]} : vector<48x8xf32> to vector<48x1xf32>
    %31 = vector.broadcast %30 : vector<48x1xf32> to vector<48x256xf32>
    %32 = arith.mulf %31, %16 : vector<48x256xf32>
    %33 = vector.broadcast %29 : vector<48x1xf32> to vector<48x256xf32>
    %34 = arith.addf %33, %32 : vector<48x256xf32>
    %35 = arith.mulf %16, %34 : vector<48x256xf32>
    %36 = arith.addf %35, %28 : vector<48x256xf32>
    %c0_12 = arith.constant 0 : index
    %c0_13 = arith.constant 0 : index
    %c0_14 = arith.constant 0 : index
    %37 = vector.load %arg7[%c0_12, %c0_13, %c0_14] : memref<1x48x256xf32, #tpu.memory_space<vmem>>, vector<1x48x256xf32>
    %38 = vector.shape_cast %37 : vector<1x48x256xf32> to vector<48x256xf32>
    %39 = vector.shape_cast %36 : vector<48x256xf32> to vector<1x48x256xf32>
    tpu.vector_store %arg7[%c0_12, %c0_13, %c0_14], %39 {strides = array<i32>} : memref<1x48x256xf32, #tpu.memory_space<vmem>>, vector<1x48x256xf32>,
    return
  }
  func.func @transform_0(%arg0: i32, %arg1: i32) -> (i32, i32, i32) {
    %c0_i32 = arith.constant 0 : i32
    %c0_i32_0 = arith.constant 0 : i32
    return %arg0, %c0_i32, %arg1 : i32, i32, i32
  }
  func.func @transform_1(%arg0: i32, %arg1: i32) -> (i32, i32) {
    %c0_i32 = arith.constant 0 : i32
    %c0_i32_0 = arith.constant 0 : i32
    %c0_i32_1 = arith.constant 0 : i32
    return %c0_i32, %c0_i32_0 : i32, i32
  }
  func.func @transform_2(%arg0: i32, %arg1: i32) -> (i32, i32) {
    %c0_i32 = arith.constant 0 : i32
    %c0_i32_0 = arith.constant 0 : i32
    %c0_i32_1 = arith.constant 0 : i32
    return %c0_i32, %c0_i32_0 : i32, i32
  }
  func.func @transform_3(%arg0: i32, %arg1: i32) -> (i32, i32) {
    %c0_i32 = arith.constant 0 : i32
    %c0_i32_0 = arith.constant 0 : i32
    return %c0_i32, %arg1 : i32, i32
  }
  func.func @transform_4(%arg0: i32, %arg1: i32) -> (i32, i32, i32) {
    %c0_i32 = arith.constant 0 : i32
    %c0_i32_0 = arith.constant 0 : i32
    return %arg0, %c0_i32, %arg1 : i32, i32, i32
  }
  func.func @transform_5(%arg0: i32, %arg1: i32) -> (i32, i32, i32) {
    %c0_i32 = arith.constant 0 : i32
    %c0_i32_0 = arith.constant 0 : i32
    return %arg0, %c0_i32, %arg1 : i32, i32, i32
  }
}

</mosaic_0001>

<llo_original>
// kernel: tpu_custom_call.1
$region0: #{tpu_custom_call.1}
  #allocation0 [shape = 'u32[]', space=smem, size = 0x4, offset = 0x4, fixed_abs, tag = 'smem constant byte address 0x4 - core index']
  #allocation1 [shape = 'u32[144,128]{1,0:T(1,128)}', space=vmem, size = 0x12000, scoped, tag = 'internal scratch']
  %s0 = inlined_call_operand.hbm [shape: f32[2,32,256], index: 0, kind: input, shape index: {}]
  %s1 = inlined_call_operand.vmem [shape: bf16[48,32], index: 1, kind: input, shape index: {}]
  %s2 = inlined_call_operand.vmem [shape: f32[48,8], index: 2, kind: input, shape index: {}]
  %s3 = inlined_call_operand.vmem [shape: f32[2,256], index: 3, kind: input, shape index: {}]
  %s4 = inlined_call_operand.hbm [shape: f32[2,48,256], index: 4, kind: output, shape index: {0}]
  %s5 = inlined_call_operand.hbm [shape: f32[2,48,256], index: 5, kind: output, shape index: {1}]
  %6 = xla_tuple %s4, %s5
  %s7 = sld [smem:[#allocation0]]
  $region61: #{tpu_custom_call.1} parent=0
    _
  %s9 = ssub.s32 1, %s7
  %s10 = scalar_select 0, %s9, %s7
  $region1: #{tpu_custom_call.1} parent=0
    #allocation2 [shape = 'u8[65536]{0}', space=vmem, size = 0x10000, scoped, tag = 'input window, operand 0']
    #allocation3 [shape = 's32[2]{0}', space=sflag, size = 0x8, scoped, tag = 'scoped memory for tpu_custom_call.1']
    #allocation4 [shape = 's32[2]{0}', space=sflag, size = 0x8, scoped, tag = 'scoped memory for tpu_custom_call.1']
    #allocation5 [shape = 'u8[98304]{0}', space=vmem, size = 0x18000, scoped, tag = 'output window, operand 0']
    #allocation6 [shape = 'u8[98304]{0}', space=vmem, size = 0x18000, scoped, tag = 'output window, operand 1']
    #allocation7 [shape = 's32[2]{0}', space=sflag, size = 0x8, scoped, tag = 'scoped memory for tpu_custom_call.1']
    %11 = vsyncpa [#allocation3], 0
    %s12 = scalar_lea.sflag [#allocation3], 1
    %13 = vsyncpa %s12, 0
    %14 = vsyncpa [#allocation4], 0
    %s15 = scalar_lea.sflag [#allocation4], 1
    %16 = vsyncpa %s15, 0
    %17 = vsyncpa [#allocation7], 0
    %s18 = scalar_lea.sflag [#allocation7], 1
    %19 = vsyncpa %s18, 0
    loop: start=0, step=1, limit=4
    $region2: #{tpu_custom_call.1} parent=1 // loop_pre_header
      _
    $region3: #{tpu_custom_call.1} parent=1 // loop_header
      %s21 = sphi 0, %s25
      %p22 = scmp.ge.s32.totalorder %s21, 4
      %s28 = sphi 0, %s40
      %s29 = sphi 0, %s36
      %s30 = sphi 0, %s28
      %s31 = sphi 0, %s29
      %s32 = sphi 0, %s30
      %s33 = sphi 0, %s31
      %s45 = sphi 0, %s47
      %s48 = sphi 0, %s45
      %s49 = sphi 0, %s48
      %s65 = sphi 0, %s49
      %s69 = sphi 0, %s69
      %s71 = sphi 0, %s69
      %s72 = sphi 0, %s71
      %s86 = sphi 0, %s72
      %s90 = sphi 0, %s90
      %s92 = sphi 0, %s90
      %s93 = sphi 0, %s92
      %s107 = sphi 0, %s93
      %s113 = sphi 0, %s115
      %s116 = sphi 0, %s113
      %s117 = sphi 0, %s116
      %s133 = sphi 0, %s117
      %s141 = sphi 0, %s143
      %s144 = sphi 0, %s141
      %s145 = sphi 0, %s144
      %s161 = sphi 0, %s145
      %s169 = sphi 0, %s171
      %s172 = sphi 0, %s169
      %s173 = sphi 0, %s172
      %s189 = sphi 0, %s173
    $region4: #{tpu_custom_call.1} parent=1 // loop_header_branch
      %24 = sbr.rel (%p22) target = $region8
    $region5: #{tpu_custom_call.1} parent=1 // loop_body
      %s26 = ssub.s32 %s21, 1
      %s27 = ssub.s32 %s21, 2
      %s34 = sadd.s32 1, %s29
      %p35 = scmp.ge.s32.totalorder %s34, 1
      %s36 = scalar_select %p35, 0, %s34
      %s37 = sadd.s32 1, %s28
      %s38 = scalar_select %p35, %s37, %s28
      %p39 = scmp.ge.s32.totalorder %s38, 2
      %s40 = scalar_select %p39, 0, %s38
      %s41 = ssub.s32 %s28, %s40
      %s42 = ssub.s32 %s29, %s36
      %s43 = sor.u32 %s41, %s42
      %p44 = scmp.eq.s32.totalorder %s43, 0
      %s46 = sadd.s32 %s45, 1
      %s47 = scalar_select %p44, %s45, %s46
      %p50 = pneg %p44
      %p51 = scmp.eq.s32.totalorder %s21, 1
      %p52 = por %p50, %p51
      %p53 = scmp.ne.s32.totalorder %s45, %s48
      %p54 = scmp.eq.s32.totalorder %s21, 0
      %p55 = por %p53, %p54
      %p56 = scmp.ne.s32.totalorder %s45, %s48
      %p57 = scmp.eq.s32.totalorder %s26, 1
      %p58 = por %p56, %p57
      %p59 = scmp.ne.s32.totalorder %s48, %s49
      %p60 = scmp.eq.s32.totalorder %s26, 0
      %p61 = por %p59, %p60
      %p62 = scmp.ne.s32.totalorder %s48, %s49
      %p63 = scmp.eq.s32.totalorder %s27, 1
      %p64 = por %p62, %p63
      %p66 = scmp.ne.s32.totalorder %s49, %s65
      %p67 = scmp.eq.s32.totalorder %s27, 0
      %p68 = por %p66, %p67
      %s70 = sadd.s32 %s69, 1
      %p73 = scmp.eq.s32.totalorder %s21, 1
      %p74 = scmp.ne.s32.totalorder %s69, %s71
      %p75 = scmp.eq.s32.totalorder %s21, 0
      %p76 = por %p74, %p75
      %p77 = scmp.ne.s32.totalorder %s69, %s71
      %p78 = scmp.eq.s32.totalorder %s26, 1
      %p79 = por %p77, %p78
      %p80 = scmp.ne.s32.totalorder %s71, %s72
      %p81 = scmp.eq.s32.totalorder %s26, 0
      %p82 = por %p80, %p81
      %p83 = scmp.ne.s32.totalorder %s71, %s72
      %p84 = scmp.eq.s32.totalorder %s27, 1
      %p85 = por %p83, %p84
      %p87 = scmp.ne.s32.totalorder %s72, %s86
      %p88 = scmp.eq.s32.totalorder %s27, 0
      %p89 = por %p87, %p88
      %s91 = sadd.s32 %s90, 1
      %p94 = scmp.eq.s32.totalorder %s21, 1
      %p95 = scmp.ne.s32.totalorder %s90, %s92
      %p96 = scmp.eq.s32.totalorder %s21, 0
      %p97 = por %p95, %p96
      %p98 = scmp.ne.s32.totalorder %s90, %s92
      %p99 = scmp.eq.s32.totalorder %s26, 1
      %p100 = por %p98, %p99
      %p101 = scmp.ne.s32.totalorder %s92, %s93
      %p102 = scmp.eq.s32.totalorder %s26, 0
      %p103 = por %p101, %p102
      %p104 = scmp.ne.s32.totalorder %s92, %s93
      %p105 = scmp.eq.s32.totalorder %s27, 1
      %p106 = por %p104, %p105
      %p108 = scmp.ne.s32.totalorder %s93, %s107
      %p109 = scmp.eq.s32.totalorder %s27, 0
      %p110 = por %p108, %p109
      %s111 = ssub.s32 %s29, %s36
      %p112 = scmp.eq.s32.totalorder %s111, 0
      %s114 = sadd.s32 %s113, 1
      %s115 = scalar_select %p112, %s113, %s114
      %p118 = pneg %p112
      %p119 = scmp.eq.s32.totalorder %s21, 1
      %p120 = por %p118, %p119
      %p121 = scmp.ne.s32.totalorder %s113, %s116
      %p122 = scmp.eq.s32.totalorder %s21, 0
      %p123 = por %p121, %p122
      %p124 = scmp.ne.s32.totalorder %s113, %s116
      %p125 = scmp.eq.s32.totalorder %s26, 1
      %p126 = por %p124, %p125
      %p127 = scmp.ne.s32.totalorder %s116, %s117
      %p128 = scmp.eq.s32.totalorder %s26, 0
      %p129 = por %p127, %p128
      %p130 = scmp.ne.s32.totalorder %s116, %s117
      %p131 = scmp.eq.s32.totalorder %s27, 1
      %p132 = por %p130, %p131
      %p134 = scmp.ne.s32.totalorder %s117, %s133
      %p135 = scmp.eq.s32.totalorder %s27, 0
      %p136 = por %p134, %p135
      %s137 = ssub.s32 %s28, %s40
      %s138 = ssub.s32 %s29, %s36
      %s139 = sor.u32 %s137, %s138
      %p140 = scmp.eq.s32.totalorder %s139, 0
      %s142 = sadd.s32 %s141, 1
      %s143 = scalar_select %p140, %s141, %s142
      %p146 = pneg %p140
      %p147 = scmp.eq.s32.totalorder %s21, 1
      %p148 = por %p146, %p147
      %p149 = scmp.ne.s32.totalorder %s141, %s144
      %p150 = scmp.eq.s32.totalorder %s21, 0
      %p151 = por %p149, %p150
      %p152 = scmp.ne.s32.totalorder %s141, %s144
      %p153 = scmp.eq.s32.totalorder %s26, 1
      %p154 = por %p152, %p153
      %p155 = scmp.ne.s32.totalorder %s144, %s145
      %p156 = scmp.eq.s32.totalorder %s26, 0
      %p157 = por %p155, %p156
      %p158 = scmp.ne.s32.totalorder %s144, %s145
      %p159 = scmp.eq.s32.totalorder %s27, 1
      %p160 = por %p158, %p159
      %p162 = scmp.ne.s32.totalorder %s145, %s161
      %p163 = scmp.eq.s32.totalorder %s27, 0
      %p164 = por %p162, %p163
      %s165 = ssub.s32 %s28, %s40
      %s166 = ssub.s32 %s29, %s36
      %s167 = sor.u32 %s165, %s166
      %p168 = scmp.eq.s32.totalorder %s167, 0
      %s170 = sadd.s32 %s169, 1
      %s171 = scalar_select %p168, %s169, %s170
      %p174 = pneg %p168
      %p175 = scmp.eq.s32.totalorder %s21, 1
      %p176 = por %p174, %p175
      %p177 = scmp.ne.s32.totalorder %s169, %s172
      %p178 = scmp.eq.s32.totalorder %s21, 0
      %p179 = por %p177, %p178
      %p180 = scmp.ne.s32.totalorder %s169, %s172
      %p181 = scmp.eq.s32.totalorder %s26, 1
      %p182 = por %p180, %p181
      %p183 = scmp.ne.s32.totalorder %s172, %s173
      %p184 = scmp.eq.s32.totalorder %s26, 0
      %p185 = por %p183, %p184
      %p186 = scmp.ne.s32.totalorder %s172, %s173
      %p187 = scmp.eq.s32.totalorder %s27, 1
      %p188 = por %p186, %p187
      %p190 = scmp.ne.s32.totalorder %s173, %s189
      %p191 = scmp.eq.s32.totalorder %s27, 0
      %p192 = por %p190, %p191
      %p193 = scmp.le.s32.totalorder 1, %s21
      %p194 = scmp.lt.s32.totalorder %s21, 3
      %p195 = pnand %p193, %p194
      %p196 = pneg %p195
      // Predicated region
      $region9: #{tpu_custom_call.1} parent=5 // pred_check
        _
      $region10: #{tpu_custom_call.1} parent=5 // pred_check_branch
        %198 = sbr.rel (%p195) target = $region12
      $region11: #{tpu_custom_call.1} parent=5 // pred_region
        %s199 = ssub.s32 %s21, 1
        // Predicated region
        $region13: #{tpu_custom_call.1} parent=11 // pred_check
          %p200 = pneg %p82
        $region14: #{tpu_custom_call.1} parent=11 // pred_check_branch
          %202 = sbr.rel (%p200) target = $region16
        $region15: #{tpu_custom_call.1} parent=11 // pred_region
          _
        $region16: #{tpu_custom_call.1} parent=11 // pred_fallthru
          _
        // Predicated region
        $region17: #{tpu_custom_call.1} parent=11 // pred_check
          %p203 = pneg %p103
        $region18: #{tpu_custom_call.1} parent=11 // pred_check_branch
          %205 = sbr.rel (%p203) target = $region20
        $region19: #{tpu_custom_call.1} parent=11 // pred_region
          _
        $region20: #{tpu_custom_call.1} parent=11 // pred_fallthru
          _
        // Predicated region
        $region21: #{tpu_custom_call.1} parent=11 // pred_check
          %p206 = pneg %p129
        $region22: #{tpu_custom_call.1} parent=11 // pred_check_branch
          %208 = sbr.rel (%p206) target = $region24
        $region23: #{tpu_custom_call.1} parent=11 // pred_region
          %s209 = smul.u32 2, %s31
          %p210 = scmp.lt.s32.totalorder %s209, 1
          %s211 = scalar_select %p210, %s209, 1
          %s212 = smul.addr %s211, 2
          %s213 = scalar_lea.vmem %s3, %s212
          %s214 = smul.u32 2, %s31
        $region24: #{tpu_custom_call.1} parent=11 // pred_fallthru
          _
      $region12: #{tpu_custom_call.1} parent=5 // pred_fallthru
        _
      %p215 = scmp.lt.s32.totalorder %s21, 2
      // Predicated region
      $region25: #{tpu_custom_call.1} parent=5 // pred_check
        %p216 = pneg %p215
      $region26: #{tpu_custom_call.1} parent=5 // pred_check_branch
        %218 = sbr.rel (%p216) target = $region28
      $region27: #{tpu_custom_call.1} parent=5 // pred_region
        // Predicated region
        $region29: #{tpu_custom_call.1} parent=27 // pred_check
          %p219 = pneg %p55
        $region30: #{tpu_custom_call.1} parent=27 // pred_check_branch
          %221 = sbr.rel (%p219) target = $region32
        $region31: #{tpu_custom_call.1} parent=27 // pred_region
          %s222 = sand.u32 %s45, 1
          %s223 = scalar_lea.sflag [#allocation3], %s222
          %s224 = sand.u32 %s45, 1
          %s225 = smul.addr %s224, 64
          %s226 = scalar_lea.vmem [#allocation2], %s225
          %s227 = smul.u32 2, %s29
          %s229 = ssub.s32 1024, 1024
          %230 = vsyncadd %s223, %s229
          %s231 = smul.addr %s28, 8
          %s232 = sadd.s32 %s227, %s231
          %s233 = smul.addr %s232, 128
          %s234 = scalar_lea.hbm %s0, %s233
          %s235 = sshll.u32 %s226, 4
          %s236 = int_to_ptr.vmem [resolvable:$true] %s235
          %241 = dma.hbm_to_vmem [thread:$0]  %s234, 1024, %s236, %s223, 256, 256, 16
        $region32: #{tpu_custom_call.1} parent=27 // pred_fallthru
          _
      $region28: #{tpu_custom_call.1} parent=5 // pred_fallthru
        _
      %p242 = scmp.le.s32.totalorder 1, %s21
      %p243 = scmp.lt.s32.totalorder %s21, 3
      %p244 = pnand %p242, %p243
      %p245 = pneg %p244
      // Predicated region
      $region33: #{tpu_custom_call.1} parent=5 // pred_check
        _
      $region34: #{tpu_custom_call.1} parent=5 // pred_check_branch
        %247 = sbr.rel (%p244) target = $region36
      $region35: #{tpu_custom_call.1} parent=5 // pred_region
        %s248 = ssub.s32 %s21, 1
        %s249 = sand.u32 %s48, 1
        %s250 = scalar_lea.sflag [#allocation3], %s249
        %s251 = sand.u32 %s48, 1
        %s252 = smul.addr %s251, 64
        %s253 = scalar_lea.vmem [#allocation2], %s252
        // Predicated region
        $region37: #{tpu_custom_call.1} parent=35 // pred_check
          %p254 = pneg %p61
        $region38: #{tpu_custom_call.1} parent=35 // pred_check_branch
          %256 = sbr.rel (%p254) target = $region40
        $region39: #{tpu_custom_call.1} parent=35 // pred_region
          %257 = dma.done %s250, 1024
        $region40: #{tpu_custom_call.1} parent=35 // pred_fallthru
          _
        %s258 = sand.u32 %s48, 1
        %s259 = scalar_lea.sflag [#allocation3], %s258
        %s260 = sand.u32 %s48, 1
        %s261 = smul.addr %s260, 64
        %s262 = scalar_lea.vmem [#allocation2], %s261
        %p263 = pneg %p61
        %p264 = pneg %p58
        %p265 = pneg %p82
        %p266 = pneg %p79
        %p267 = pneg %p103
        %p268 = pneg %p100
        %s269 = smul.u32 2, %s31
        %p270 = scmp.lt.s32.totalorder %s269, 1
        %s271 = scalar_select %p270, %s269, 1
        %s272 = smul.addr %s271, 2
        %s273 = scalar_lea.vmem %s3, %s272
        %p274 = pneg %p129
        %p275 = pneg %p126
        %p276 = pneg %p157
        %p277 = pneg %p154
        %s278 = sand.u32 %s144, 1
        %s279 = scalar_lea.sflag [#allocation4], %s278
        %s280 = sand.u32 %s144, 1
        %s281 = smul.addr %s280, 96
        %s282 = scalar_lea.vmem [#allocation5], %s281
        %p283 = pneg %p185
        %p284 = pneg %p182
        %s285 = sand.u32 %s172, 1
        %s286 = scalar_lea.sflag [#allocation7], %s285
        %s287 = sand.u32 %s172, 1
        %s288 = smul.addr %s287, 96
        %s289 = scalar_lea.vmem [#allocation6], %s288
        %s290 = smul.u32 2, %s31
        %s291 = smul.u32 2, %s31
        %p292 = scmp.lt.s32.totalorder %s291, 1
        %s293 = scalar_select %p292, %s291, 1
        %s294 = smul.addr %s293, 2
        %s295 = scalar_lea.vmem %s3, %s294
        %s296 = smul.u32 2, %s31
        %s297 = smul.u32 2, %s31
        %s298 = smul.u32 2, %s31
        %v300 = vld [vmem:[%s253] sm:$0xff]
        %v301 = vld [vmem:[%s253 + $0x8] sm:$0xff]
        %v302 = vld [vmem:[%s253 + $0x10] sm:$0xff]
        %v303 = vld [vmem:[%s253 + $0x18] sm:$0xff]
        %v304 = vld [vmem:[%s253 + $0x20] sm:$0xff]
        %v305 = vld [vmem:[%s253 + $0x28] sm:$0xff]
        %v306 = vld [vmem:[%s253 + $0x30] sm:$0xff]
        %v307 = vld [vmem:[%s253 + $0x38] sm:$0xff]
        %v308 = vld [vmem:[%s1] sm:$0xf]
        %v309 = vld [vmem:[%s1 + $0x4] sm:$0xf]
        %v310 = vld [vmem:[%s1 + $0x8] sm:$0xf]
        %v311 = vld [vmem:[%s1 + $0xc] sm:$0xf]
        %v312 = vld [vmem:[%s1 + $0x10] sm:$0xf]
        %v313 = vld [vmem:[%s1 + $0x14] sm:$0xf]
        %v314 = vpack.c.bf16 %v302, %v300
        %v315 = vpack.c.bf16 %v303, %v301
        %v316 = vpack.c.bf16 %v306, %v304
        %v317 = vpack.c.bf16 %v307, %v305
        %v318 = vld [vmem:[%s2] sm:$0xff]
        %v319 = vld [vmem:[%s2 + $0x8] sm:$0xff]
        %v320 = vld [vmem:[%s2 + $0x10] sm:$0xff]
        %v321 = vld [vmem:[%s2 + $0x18] sm:$0xff]
        %v322 = vld [vmem:[%s2 + $0x20] sm:$0xff]
        %v323 = vld [vmem:[%s2 + $0x28] sm:$0xff]
        %325 = vset.pattern.permute.xlu0 0
        %326 = vperm.xlu0 %325, %v318
        %v327 = vpop.permute.xlu0 %326
        %330 = vset.pattern.permute.xlu0 0
        %331 = vperm.xlu0 %330, %v319
        %v332 = vpop.permute.xlu0 %331
        %335 = vset.pattern.permute.xlu0 0
        %336 = vperm.xlu0 %335, %v320
        %v337 = vpop.permute.xlu0 %336
        %340 = vset.pattern.permute.xlu0 0
        %341 = vperm.xlu0 %340, %v321
        %v342 = vpop.permute.xlu0 %341
        %345 = vset.pattern.permute.xlu0 0
        %346 = vperm.xlu0 %345, %v322
        %v347 = vpop.permute.xlu0 %346
        %350 = vset.pattern.permute.xlu0 0
        %351 = vperm.xlu0 %350, %v323
        %v352 = vpop.permute.xlu0 %351
        %v360 = vunpack.c.l.b16 %v308
        %v361 = vunpack.c.l.b16 %v309
        %v362 = vunpack.c.l.b16 %v310
        %v363 = vunpack.c.l.b16 %v311
        %v364 = vunpack.c.l.b16 %v312
        %v365 = vunpack.c.l.b16 %v313
        %v366 = vpack.c.b16 %v361, %v360
        %v367 = vpack.c.b16 %v363, %v362
        %v368 = vpack.c.b16 %v365, %v364
        %vm369 = vcmask 261120
        %v371 = vsel %vm369, %v366, 0
        %v374 = vsel %vm369, %v367, 0
        %v377 = vsel %vm369, %v368, 0
        %379 = vmatprep.subr.bf16.mxu0 %v315
        %380 = vmatpush1.bf16.msra.mxu0 %v314
        %381 = vmatprep.subr.bf16.mxu0 %v317
        %382 = vmatpush1.bf16.msra.mxu0 %v316
        %383 = vmatprep.subr.bf16.mxu0 0
        %384 = vmatpush1.bf16.msra.mxu0 0
        %385 = vmatprep.subr.bf16.mxu0 0
        %386 = vmatpush1.bf16.msra.mxu0 0
        %387 = vmatprep.subr.bf16.mxu0 0
        %388 = vmatpush1.bf16.msra.mxu0 0
        %389 = vmatprep.subr.bf16.mxu0 0
        %390 = vmatpush1.bf16.msra.mxu0 0
        %391 = vmatprep.subr.bf16.mxu0 0
        %392 = vmatpush1.bf16.msra.mxu0 0
        %393 = vmatprep.subr.bf16.mxu0 0
        %394 = vmatpush1.bf16.msra.mxu0 0
        %395 = vmatprep.subr.bf16.mxu0 0
        %396 = vmatpush1.bf16.msra.mxu0 0
        %397 = vmatprep.subr.bf16.mxu0 0
        %398 = vmatpush1.bf16.msra.mxu0 0
        %399 = vmatprep.subr.bf16.mxu0 0
        %400 = vmatpush1.bf16.msra.mxu0 0
        %401 = vmatprep.subr.bf16.mxu0 0
        %402 = vmatpush1.bf16.msra.mxu0 0
        %403 = vmatprep.subr.bf16.mxu0 0
        %404 = vmatpush1.bf16.msra.mxu0 0
        %405 = vmatprep.subr.bf16.mxu0 0
        %406 = vmatpush1.bf16.msra.mxu0 0
        %407 = vmatprep.subr.bf16.mxu0 0
        %408 = vmatpush1.bf16.msra.mxu0 0
        %409 = vmatprep.subr.bf16.mxu0 0
        %410 = vmatpush1.bf16.msra.mxu0 0
        %411 = vmatprep.mubr.bf16.mxu0 0
        %412 = vmatmul.mubr.bf16.gmra.mrb[0].mxu0 %v371
        %v413 = vpop.f32.mrb[0].mxu0
        %v414 = vadd.f32 %v327, %v413
        %v415 = vpop.f32.mrb[0].mxu0
        %v416 = vadd.f32 %v327, %v415
        %v417 = vpop.f32.mrb[0].mxu0
        %v418 = vadd.f32 %v332, %v417
        %v419 = vpop.f32.mrb[0].mxu0
        %v420 = vadd.f32 %v332, %v419
        %421 = vmatprep.mubr.bf16.mxu0 0
        %422 = vmatmul.mubr.bf16.gmra.mrb[0].mxu0 %v374
        %v423 = vpop.f32.mrb[0].mxu0
        %v424 = vadd.f32 %v337, %v423
        %v425 = vpop.f32.mrb[0].mxu0
        %v426 = vadd.f32 %v337, %v425
        %v427 = vpop.f32.mrb[0].mxu0
        %v428 = vadd.f32 %v342, %v427
        %v429 = vpop.f32.mrb[0].mxu0
        %v430 = vadd.f32 %v342, %v429
        %431 = vmatprep.mubr.bf16.mxu0 0
        %432 = vmatmul.mubr.bf16.gmra.mrb[0].mxu0 %v377
        %v433 = vpop.f32.mrb[0].mxu0
        %v434 = vadd.f32 %v347, %v433
        %v435 = vpop.f32.mrb[0].mxu0
        %v436 = vadd.f32 %v347, %v435
        %v437 = vpop.f32.mrb[0].mxu0
        %v438 = vadd.f32 %v352, %v437
        %v439 = vpop.f32.mrb[0].mxu0
        %v440 = vadd.f32 %v352, %v439
        %441 = vdwg.mxu0
        %442 = vst [vmem:[%s282] sm:$0xff] %v414
        %443 = vst [vmem:[%s282 + $0x8] sm:$0xff] %v416
        %444 = vst [vmem:[%s282 + $0x10] sm:$0xff] %v418
        %445 = vst [vmem:[%s282 + $0x18] sm:$0xff] %v420
        %446 = vst [vmem:[%s282 + $0x20] sm:$0xff] %v424
        %447 = vst [vmem:[%s282 + $0x28] sm:$0xff] %v426
        %448 = vst [vmem:[%s282 + $0x30] sm:$0xff] %v428
        %449 = vst [vmem:[%s282 + $0x38] sm:$0xff] %v430
        %450 = vst [vmem:[%s282 + $0x40] sm:$0xff] %v434
        %451 = vst [vmem:[%s282 + $0x48] sm:$0xff] %v436
        %452 = vst [vmem:[%s282 + $0x50] sm:$0xff] %v438
        %453 = vst [vmem:[%s282 + $0x58] sm:$0xff] %v440
        %v454 = vxor.u32 %v414, 2147483648
        %v455 = vxor.u32 %v416, 2147483648
        %v456 = vxor.u32 %v418, 2147483648
        %v457 = vxor.u32 %v420, 2147483648
        %v458 = vxor.u32 %v424, 2147483648
        %v459 = vxor.u32 %v426, 2147483648
        %v460 = vxor.u32 %v428, 2147483648
        %v461 = vxor.u32 %v430, 2147483648
        %v462 = vxor.u32 %v434, 2147483648
        %v463 = vxor.u32 %v436, 2147483648
        %v464 = vxor.u32 %v438, 2147483648
        %v465 = vxor.u32 %v440, 2147483648
        %v466 = vmul.f32 %v454, 1.442695
        %v467 = vpow.pop %v466
        %v468 = vmul.f32 %v455, 1.442695
        %v469 = vpow.pop %v468
        %v470 = vmul.f32 %v456, 1.442695
        %v471 = vpow.pop %v470
        %v472 = vmul.f32 %v457, 1.442695
        %v473 = vpow.pop %v472
        %v474 = vmul.f32 %v458, 1.442695
        %v475 = vpow.pop %v474
        %v476 = vmul.f32 %v459, 1.442695
        %v477 = vpow.pop %v476
        %v478 = vmul.f32 %v460, 1.442695
        %v479 = vpow.pop %v478
        %v480 = vmul.f32 %v461, 1.442695
        %v481 = vpow.pop %v480
        %v482 = vmul.f32 %v462, 1.442695
        %v483 = vpow.pop %v482
        %v484 = vmul.f32 %v463, 1.442695
        %v485 = vpow.pop %v484
        %v486 = vmul.f32 %v464, 1.442695
        %v487 = vpow.pop %v486
        %v488 = vmul.f32 %v465, 1.442695
        %v489 = vpow.pop %v488
        %v490 = vadd.f32 %v467, 1.0
        %v491 = vadd.f32 %v469, 1.0
        %v492 = vadd.f32 %v471, 1.0
        %v493 = vadd.f32 %v473, 1.0
        %v494 = vadd.f32 %v475, 1.0
        %v495 = vadd.f32 %v477, 1.0
        %v496 = vadd.f32 %v479, 1.0
        %v497 = vadd.f32 %v481, 1.0
        %v498 = vadd.f32 %v483, 1.0
        %v499 = vadd.f32 %v485, 1.0
        %v500 = vadd.f32 %v487, 1.0
        %v501 = vadd.f32 %v489, 1.0
        %v502 = vrcp.pop %v490
        %v503 = vmul.f32 1.0, %v502
        %v504 = vrcp.pop %v491
        %v505 = vmul.f32 1.0, %v504
        %v506 = vrcp.pop %v492
        %v507 = vmul.f32 1.0, %v506
        %v508 = vrcp.pop %v493
        %v509 = vmul.f32 1.0, %v508
        %v510 = vrcp.pop %v494
        %v511 = vmul.f32 1.0, %v510
        %v512 = vrcp.pop %v495
        %v513 = vmul.f32 1.0, %v512
        %v514 = vrcp.pop %v496
        %v515 = vmul.f32 1.0, %v514
        %v516 = vrcp.pop %v497
        %v517 = vmul.f32 1.0, %v516
        %v518 = vrcp.pop %v498
        %v519 = vmul.f32 1.0, %v518
        %v520 = vrcp.pop %v499
        %v521 = vmul.f32 1.0, %v520
        %v522 = vrcp.pop %v500
        %v523 = vmul.f32 1.0, %v522
        %v524 = vrcp.pop %v501
        %v525 = vmul.f32 1.0, %v524
        %v526 = vld [vmem:[%s295] sm:$0xf]
        %527 = vset.pattern.permute.xlu0 3
        %528 = vperm.xlu0 %527, %v318
        %v529 = vpop.permute.xlu0 %528
        %531 = vset.pattern.permute.xlu0 3
        %532 = vperm.xlu0 %531, %v319
        %v533 = vpop.permute.xlu0 %532
        %535 = vset.pattern.permute.xlu0 3
        %536 = vperm.xlu0 %535, %v320
        %v537 = vpop.permute.xlu0 %536
        %539 = vset.pattern.permute.xlu0 3
        %540 = vperm.xlu0 %539, %v321
        %v541 = vpop.permute.xlu0 %540
        %543 = vset.pattern.permute.xlu0 3
        %544 = vperm.xlu0 %543, %v322
        %v545 = vpop.permute.xlu0 %544
        %547 = vset.pattern.permute.xlu0 3
        %548 = vperm.xlu0 %547, %v323
        %v549 = vpop.permute.xlu0 %548
        %v552 = vlaneseq
        %v553 = vshrl.u32 %v552, 7
        %v554 = vsub.s32 0, %v553
        %v555 = vrot.slane %v526, %v554
        %v556 = vlaneseq
        %v557 = vshrl.u32 %v556, 7
        %v558 = vsub.s32 2, %v557
        %v559 = vrot.slane %v526, %v558
        %v562 = vlaneseq
        %v563 = vshrl.u32 %v562, 7
        %v564 = vsub.s32 0, %v563
        %v565 = vrot.slane %v555, %v564
        %v566 = vlaneseq
        %v567 = vshrl.u32 %v566, 7
        %v568 = vsub.s32 0, %v567
        %v569 = vrot.slane %v559, %v568
        %v570 = vmul.f32 %v529, %v565
        %v571 = vmul.f32 %v529, %v569
        %v572 = vmul.f32 %v533, %v565
        %v573 = vmul.f32 %v533, %v569
        %v574 = vmul.f32 %v537, %v565
        %v575 = vmul.f32 %v537, %v569
        %v576 = vmul.f32 %v541, %v565
        %v577 = vmul.f32 %v541, %v569
        %v578 = vmul.f32 %v545, %v565
        %v579 = vmul.f32 %v545, %v569
        %v580 = vmul.f32 %v549, %v565
        %v581 = vmul.f32 %v549, %v569
        %582 = vset.pattern.permute.xlu0 4
        %583 = vperm.xlu0 %582, %v318
        %v584 = vpop.permute.xlu0 %583
        %586 = vset.pattern.permute.xlu0 4
        %587 = vperm.xlu0 %586, %v319
        %v588 = vpop.permute.xlu0 %587
        %590 = vset.pattern.permute.xlu0 4
        %591 = vperm.xlu0 %590, %v320
        %v592 = vpop.permute.xlu0 %591
        %594 = vset.pattern.permute.xlu0 4
        %595 = vperm.xlu0 %594, %v321
        %v596 = vpop.permute.xlu0 %595
        %598 = vset.pattern.permute.xlu0 4
        %599 = vperm.xlu0 %598, %v322
        %v600 = vpop.permute.xlu0 %599
        %602 = vset.pattern.permute.xlu0 4
        %603 = vperm.xlu0 %602, %v323
        %v604 = vpop.permute.xlu0 %603
        %v606 = vlaneseq
        %v607 = vshrl.u32 %v606, 7
        %v608 = vsub.s32 1, %v607
        %v609 = vrot.slane %v526, %v608
        %v610 = vlaneseq
        %v611 = vshrl.u32 %v610, 7
        %v612 = vsub.s32 3, %v611
        %v613 = vrot.slane %v526, %v612
        %v616 = vlaneseq
        %v617 = vshrl.u32 %v616, 7
        %v618 = vsub.s32 1, %v617
        %v619 = vrot.slane %v609, %v618
        %v620 = vlaneseq
        %v621 = vshrl.u32 %v620, 7
        %v622 = vsub.s32 1, %v621
        %v623 = vrot.slane %v613, %v622
        %v624 = vmul.f32 %v584, %v619
        %v625 = vmul.f32 %v584, %v623
        %v626 = vmul.f32 %v588, %v619
        %v627 = vmul.f32 %v588, %v623
        %v628 = vmul.f32 %v592, %v619
        %v629 = vmul.f32 %v592, %v623
        %v630 = vmul.f32 %v596, %v619
        %v631 = vmul.f32 %v596, %v623
        %v632 = vmul.f32 %v600, %v619
        %v633 = vmul.f32 %v600, %v623
        %v634 = vmul.f32 %v604, %v619
        %v635 = vmul.f32 %v604, %v623
        %v636 = vadd.f32 %v570, %v624
        %v637 = vadd.f32 %v571, %v625
        %v638 = vadd.f32 %v572, %v626
        %v639 = vadd.f32 %v573, %v627
        %v640 = vadd.f32 %v574, %v628
        %v641 = vadd.f32 %v575, %v629
        %v642 = vadd.f32 %v576, %v630
        %v643 = vadd.f32 %v577, %v631
        %v644 = vadd.f32 %v578, %v632
        %v645 = vadd.f32 %v579, %v633
        %v646 = vadd.f32 %v580, %v634
        %v647 = vadd.f32 %v581, %v635
        %648 = vset.pattern.permute.xlu0 2
        %649 = vperm.xlu0 %648, %v318
        %v650 = vpop.permute.xlu0 %649
        %652 = vset.pattern.permute.xlu0 2
        %653 = vperm.xlu0 %652, %v319
        %v654 = vpop.permute.xlu0 %653
        %656 = vset.pattern.permute.xlu0 2
        %657 = vperm.xlu0 %656, %v320
        %v658 = vpop.permute.xlu0 %657
        %660 = vset.pattern.permute.xlu0 2
        %661 = vperm.xlu0 %660, %v321
        %v662 = vpop.permute.xlu0 %661
        %664 = vset.pattern.permute.xlu0 2
        %665 = vperm.xlu0 %664, %v322
        %v666 = vpop.permute.xlu0 %665
        %668 = vset.pattern.permute.xlu0 2
        %669 = vperm.xlu0 %668, %v323
        %v670 = vpop.permute.xlu0 %669
        %v672 = vmul.f32 %v650, %v503
        %v673 = vmul.f32 %v650, %v505
        %v674 = vmul.f32 %v654, %v507
        %v675 = vmul.f32 %v654, %v509
        %v676 = vmul.f32 %v658, %v511
        %v677 = vmul.f32 %v658, %v513
        %v678 = vmul.f32 %v662, %v515
        %v679 = vmul.f32 %v662, %v517
        %v680 = vmul.f32 %v666, %v519
        %v681 = vmul.f32 %v666, %v521
        %v682 = vmul.f32 %v670, %v523
        %v683 = vmul.f32 %v670, %v525
        %684 = vset.pattern.permute.xlu0 1
        %685 = vperm.xlu0 %684, %v318
        %v686 = vpop.permute.xlu0 %685
        %688 = vset.pattern.permute.xlu0 1
        %689 = vperm.xlu0 %688, %v319
        %v690 = vpop.permute.xlu0 %689
        %692 = vset.pattern.permute.xlu0 1
        %693 = vperm.xlu0 %692, %v320
        %v694 = vpop.permute.xlu0 %693
        %696 = vset.pattern.permute.xlu0 1
        %697 = vperm.xlu0 %696, %v321
        %v698 = vpop.permute.xlu0 %697
        %700 = vset.pattern.permute.xlu0 1
        %701 = vperm.xlu0 %700, %v322
        %v702 = vpop.permute.xlu0 %701
        %704 = vset.pattern.permute.xlu0 1
        %705 = vperm.xlu0 %704, %v323
        %v706 = vpop.permute.xlu0 %705
        %v708 = vadd.f32 %v686, %v672
        %v709 = vadd.f32 %v686, %v673
        %v710 = vadd.f32 %v690, %v674
        %v711 = vadd.f32 %v690, %v675
        %v712 = vadd.f32 %v694, %v676
        %v713 = vadd.f32 %v694, %v677
        %v714 = vadd.f32 %v698, %v678
        %v715 = vadd.f32 %v698, %v679
        %v716 = vadd.f32 %v702, %v680
        %v717 = vadd.f32 %v702, %v681
        %v718 = vadd.f32 %v706, %v682
        %v719 = vadd.f32 %v706, %v683
        %v720 = vmul.f32 %v503, %v708
        %v721 = vmul.f32 %v505, %v709
        %v722 = vmul.f32 %v507, %v710
        %v723 = vmul.f32 %v509, %v711
        %v724 = vmul.f32 %v511, %v712
        %v725 = vmul.f32 %v513, %v713
        %v726 = vmul.f32 %v515, %v714
        %v727 = vmul.f32 %v517, %v715
        %v728 = vmul.f32 %v519, %v716
        %v729 = vmul.f32 %v521, %v717
        %v730 = vmul.f32 %v523, %v718
        %v731 = vmul.f32 %v525, %v719
        %v732 = vadd.f32 %v720, %v636
        %v733 = vadd.f32 %v721, %v637
        %v734 = vadd.f32 %v722, %v638
        %v735 = vadd.f32 %v723, %v639
        %v736 = vadd.f32 %v724, %v640
        %v737 = vadd.f32 %v725, %v641
        %v738 = vadd.f32 %v726, %v642
        %v739 = vadd.f32 %v727, %v643
        %v740 = vadd.f32 %v728, %v644
        %v741 = vadd.f32 %v729, %v645
        %v742 = vadd.f32 %v730, %v646
        %v743 = vadd.f32 %v731, %v647
        %744 = vst [vmem:[%s289] sm:$0xff] %v732
        %745 = vst [vmem:[%s289 + $0x8] sm:$0xff] %v733
        %746 = vst [vmem:[%s289 + $0x10] sm:$0xff] %v734
        %747 = vst [vmem:[%s289 + $0x18] sm:$0xff] %v735
        %748 = vst [vmem:[%s289 + $0x20] sm:$0xff] %v736
        %749 = vst [vmem:[%s289 + $0x28] sm:$0xff] %v737
        %750 = vst [vmem:[%s289 + $0x30] sm:$0xff] %v738
        %751 = vst [vmem:[%s289 + $0x38] sm:$0xff] %v739
        %752 = vst [vmem:[%s289 + $0x40] sm:$0xff] %v740
        %753 = vst [vmem:[%s289 + $0x48] sm:$0xff] %v741
        %754 = vst [vmem:[%s289 + $0x50] sm:$0xff] %v742
        %755 = vst [vmem:[%s289 + $0x58] sm:$0xff] %v743
        %s756 = sand.u32 %s144, 1
        %s757 = scalar_lea.sflag [#allocation4], %s756
        %s758 = sand.u32 %s144, 1
        %s759 = smul.addr %s758, 96
        %s760 = scalar_lea.vmem [#allocation5], %s759
        %s761 = sand.u32 %s172, 1
        %s762 = scalar_lea.sflag [#allocation7], %s761
        %s763 = sand.u32 %s172, 1
        %s764 = smul.addr %s763, 96
        %s765 = scalar_lea.vmem [#allocation6], %s764
        // Predicated region
        $region41: #{tpu_custom_call.1} parent=35 // pred_check
          %p766 = pneg %p154
        $region42: #{tpu_custom_call.1} parent=35 // pred_check_branch
          %768 = sbr.rel (%p766) target = $region44
        $region43: #{tpu_custom_call.1} parent=35 // pred_region
          %s769 = smul.u32 2, %s31
          %s771 = ssub.s32 1536, 1536
          %772 = vsyncadd %s757, %s771
          %s773 = smul.addr %s30, 12
          %s774 = sadd.s32 %s769, %s773
          %s775 = smul.addr %s774, 128
          %s776 = scalar_lea.hbm %s4, %s775
          %s777 = sshll.u32 %s760, 4
          %s778 = int_to_ptr.vmem [resolvable:$true] %s777
          %783 = dma.vmem_to_hbm [thread:$0]  %s778, 1536, %s776, %s757, 256, 256, 16
        $region44: #{tpu_custom_call.1} parent=35 // pred_fallthru
          _
        // Predicated region
        $region45: #{tpu_custom_call.1} parent=35 // pred_check
          %p784 = pneg %p182
        $region46: #{tpu_custom_call.1} parent=35 // pred_check_branch
          %786 = sbr.rel (%p784) target = $region48
        $region47: #{tpu_custom_call.1} parent=35 // pred_region
          %s787 = smul.u32 2, %s31
          %s789 = ssub.s32 1536, 1536
          %790 = vsyncadd %s762, %s789
          %s791 = smul.addr %s30, 12
          %s792 = sadd.s32 %s787, %s791
          %s793 = smul.addr %s792, 128
          %s794 = scalar_lea.hbm %s5, %s793
          %s795 = sshll.u32 %s765, 4
          %s796 = int_to_ptr.vmem [resolvable:$true] %s795
          %801 = dma.vmem_to_hbm [thread:$0]  %s796, 1536, %s794, %s762, 256, 256, 16
        $region48: #{tpu_custom_call.1} parent=35 // pred_fallthru
          _
      $region36: #{tpu_custom_call.1} parent=5 // pred_fallthru
        _
      %p802 = scmp.le.s32.totalorder 2, %s21
      // Predicated region
      $region49: #{tpu_custom_call.1} parent=5 // pred_check
        %p803 = pneg %p802
      $region50: #{tpu_custom_call.1} parent=5 // pred_check_branch
        %805 = sbr.rel (%p803) target = $region52
      $region51: #{tpu_custom_call.1} parent=5 // pred_region
        %s806 = ssub.s32 %s21, 2
        // Predicated region
        $region53: #{tpu_custom_call.1} parent=51 // pred_check
          %p807 = pneg %p160
        $region54: #{tpu_custom_call.1} parent=51 // pred_check_branch
          %809 = sbr.rel (%p807) target = $region56
        $region55: #{tpu_custom_call.1} parent=51 // pred_region
          %s810 = sand.u32 %s145, 1
          %s811 = scalar_lea.sflag [#allocation4], %s810
          %s812 = sand.u32 %s145, 1
          %s813 = smul.addr %s812, 96
          %s814 = scalar_lea.vmem [#allocation5], %s813
          %815 = dma.done %s811, 1536
        $region56: #{tpu_custom_call.1} parent=51 // pred_fallthru
          _
        // Predicated region
        $region57: #{tpu_custom_call.1} parent=51 // pred_check
          %p816 = pneg %p188
        $region58: #{tpu_custom_call.1} parent=51 // pred_check_branch
          %818 = sbr.rel (%p816) target = $region60
        $region59: #{tpu_custom_call.1} parent=51 // pred_region
          %s819 = sand.u32 %s173, 1
          %s820 = scalar_lea.sflag [#allocation7], %s819
          %s821 = sand.u32 %s173, 1
          %s822 = smul.addr %s821, 96
          %s823 = scalar_lea.vmem [#allocation6], %s822
          %824 = dma.done %s820, 1536
        $region60: #{tpu_custom_call.1} parent=51 // pred_fallthru
          _
      $region52: #{tpu_custom_call.1} parent=5 // pred_fallthru
        _
    $region6: #{tpu_custom_call.1} parent=1 // loop_footer
      %s25 = sadd.s32 1, %s21
    $region7: #{tpu_custom_call.1} parent=1 // loop_footer_branch
      %20 = sbr.rel target = $region3
    $region8: #{tpu_custom_call.1} parent=1 // loop_exit
      _
    %825 = vsyncpa [#allocation3], 1
    %s826 = scalar_lea.sflag [#allocation3], 1
    %827 = vsyncpa %s826, 1
    %828 = vsyncpa [#allocation4], 1
    %s829 = scalar_lea.sflag [#allocation4], 1
    %830 = vsyncpa %s829, 1
    %831 = vsyncpa [#allocation7], 1
    %s832 = scalar_lea.sflag [#allocation7], 1
    %833 = vsyncpa %s832, 1

</llo_original>
